<compile_context>
chip_gen: v7x
topology: tpu7x:2x2x1
jax: 0.10.0
libtpu: 0.0.40
codegen_flags: <defaults>
</compile_context>

<pallas_src>
import functools

import jax
import jax.numpy as jnp
from jax.experimental import pallas as pl
from jax.experimental.pallas import tpu as pltpu

HIDDEN = 64


def _round_up(n, m):
    return ((n + m - 1) // m) * m


def _choose_tiling(batch):
    """Pick (padded_batch, batch_tile): tile multiple of 8, >=128 when possible."""
    if batch >= 128:
        b_pad = _round_up(batch, 128)
        for tb in (512, 256, 128):
            if b_pad % tb == 0:
                return b_pad, tb
    b_pad = _round_up(batch, 8)
    for tb in (512, 256, 128, 64, 32, 16, 8):
        if b_pad % tb == 0:
            return b_pad, tb
    return b_pad, b_pad


def _make_kernel(ad, ac):
    """Kernel closed over the static head sizes (discrete, continuous)."""

    def kernel(x_ref, w1_ref, b1_ref, w2_ref, b2_ref, wh_ref, bh_ref, out_ref):
        # Shared trunk: Linear -> tanh -> Linear -> tanh (f32 accumulate).
        x = x_ref[...]
        h1 = jnp.tanh(
            jnp.dot(x, w1_ref[...], preferred_element_type=jnp.float32)
            + b1_ref[...])
        h2 = jnp.tanh(
            jnp.dot(h1, w2_ref[...], preferred_element_type=jnp.float32)
            + b2_ref[...])

        # Fused heads: one lane-dense matmul producing [logits | mean | value | pad].
        heads = (jnp.dot(h2, wh_ref[...], preferred_element_type=jnp.float32)
                 + bh_ref[...])

        # tanh applies only to the continuous-mean lanes [ad, ad+ac).
        col = jax.lax.broadcasted_iota(jnp.int32, heads.shape, 1)
        is_mean = (col >= ad) & (col < ad + ac)
        out_ref[...] = jnp.where(is_mean, jnp.tanh(heads), heads)

    return kernel


@functools.partial(jax.jit, static_argnames=())
def actor_critic_forward(x, params):
    B, obs_dim = x.shape
    ad = params["wd"].shape[1]          # discrete action dim
    ac = params["wm"].shape[1]          # continuous action dim
    n_out = ad + ac + 1
    out_pad = max(128, _round_up(n_out, 128))   # lane-dense packed output width

    # Fuse head weights/biases:  [ wd | wm | wc | zero-pad ]  -> (HIDDEN, out_pad)
    wh = jnp.zeros((HIDDEN, out_pad), jnp.float32)
    wh = (wh.at[:, :ad].set(params["wd"])
            .at[:, ad:ad + ac].set(params["wm"])
            .at[:, ad + ac:n_out].set(params["wc"]))
    bh = jnp.zeros((1, out_pad), jnp.float32)
    bh = (bh.at[:, :ad].set(params["bd"])
            .at[:, ad:ad + ac].set(params["bm"])
            .at[:, ad + ac:n_out].set(params["bc"]))

    b_pad, tb = _choose_tiling(B)
    x_p = x if b_pad == B else jnp.pad(x, ((0, b_pad - B), (0, 0)))

    const2 = lambda i: (0, 0)           # weights/biases: VMEM-resident across tiles

    packed = pl.pallas_call(
        _make_kernel(ad, ac),
        out_shape=jax.ShapeDtypeStruct((b_pad, out_pad), jnp.float32),
        grid_spec=pltpu.PrefetchScalarGridSpec(
            num_scalar_prefetch=0,
            grid=(b_pad // tb,),
            in_specs=[
                pl.BlockSpec((tb, obs_dim), lambda i: (i, 0)),       # x tile
                pl.BlockSpec((obs_dim, HIDDEN), const2),             # w1
                pl.BlockSpec((1, HIDDEN), const2),                   # b1
                pl.BlockSpec((HIDDEN, HIDDEN), const2),              # w2
                pl.BlockSpec((1, HIDDEN), const2),                   # b2
                pl.BlockSpec((HIDDEN, out_pad), const2),             # fused head W
                pl.BlockSpec((1, out_pad), const2),                  # fused head b
            ],
            out_specs=pl.BlockSpec((tb, out_pad), lambda i: (i, 0)),  # packed slab
        ),
        compiler_params=pltpu.CompilerParams(
            dimension_semantics=("parallel",),      # v7x: shard tiles over 2 TCs
            vmem_limit_bytes=32 << 20,              # explicit budget (v7x-safe)
        ),
    )(x_p, params["w1"], params["b1"], params["w2"], params["b2"], wh, bh)

    logits = packed[:B, :ad]
    mean = packed[:B, ad:ad + ac]
    value = packed[:B, ad + ac:ad + ac + 1]
    # log_std is a pure broadcast of a (1, Ac) parameter: no kernel writeback.
    log_std = jnp.broadcast_to(params["log_std"], (B, ac))
    return logits, mean, log_std, value


def init_params(key, obs_dim, action_dim_discrete, action_dim_continuous):
    """Deterministic init mirroring torch.nn.Linear default U(-1/sqrt(fan_in), +)."""
    def linear(k, fan_in, fan_out):
        kw, kb = jax.random.split(k)
        bound = 1.0 / jnp.sqrt(fan_in)
        w = jax.random.uniform(kw, (fan_in, fan_out), jnp.float32, -bound, bound)
        b = jax.random.uniform(kb, (1, fan_out), jnp.float32, -bound, bound)
        return w, b

    k1, k2, kd, km, kc = jax.random.split(key, 5)
    w1, b1 = linear(k1, obs_dim, HIDDEN)
    w2, b2 = linear(k2, HIDDEN, HIDDEN)
    wd, bd = linear(kd, HIDDEN, action_dim_discrete)
    wm, bm = linear(km, HIDDEN, action_dim_continuous)
    wc, bc = linear(kc, HIDDEN, 1)
    log_std = jnp.zeros((1, action_dim_continuous), jnp.float32)  # nn.Parameter(zeros)
    return dict(w1=w1, b1=b1, w2=w2, b2=b2, wd=wd, bd=bd,
                wm=wm, bm=bm, wc=wc, bc=bc, log_std=log_std)


def reference_forward(x, p):
    h = jnp.tanh(x @ p["w1"] + p["b1"])
    h = jnp.tanh(h @ p["w2"] + p["b2"])
    logits = h @ p["wd"] + p["bd"]
    mean = jnp.tanh(h @ p["wm"] + p["bm"])
    log_std = jnp.broadcast_to(p["log_std"], mean.shape)
    value = h @ p["wc"] + p["bc"]
    return logits, mean, log_std, value


if __name__ == "__main__":
    batch = 4
    obs_dim = 16
    action_dim_discrete = 6
    action_dim_continuous = 3

    key = jax.random.PRNGKey(0)
    kx, kp = jax.random.split(key)
    x = jax.random.normal(kx, (batch, obs_dim), jnp.float32)
    params = init_params(kp, obs_dim, action_dim_discrete, action_dim_continuous)

    logits, mean, log_std, value = jax.block_until_ready(
        actor_critic_forward(x, params))

    ref = reference_forward(x, params)
    for got, want in zip((logits, mean, log_std, value), ref):
        assert got.shape == want.shape, (got.shape, want.shape)
        assert got.dtype == want.dtype, (got.dtype, want.dtype)
        assert jnp.allclose(got, want, atol=1e-5, rtol=1e-5)

    print("KERNEL_OK")
</pallas_src>

<mosaic_0001>
module attributes {stable_mosaic.version = 11 : i64} {
  func.func @kernel(%arg0: i32, %arg1: memref<8x16xf32, #tpu.memory_space<vmem>>, %arg2: memref<16x64xf32, #tpu.memory_space<vmem>>, %arg3: memref<1x64xf32, #tpu.memory_space<vmem>>, %arg4: memref<64x64xf32, #tpu.memory_space<vmem>>, %arg5: memref<1x64xf32, #tpu.memory_space<vmem>>, %arg6: memref<64x128xf32, #tpu.memory_space<vmem>>, %arg7: memref<1x128xf32, #tpu.memory_space<vmem>>, %arg8: memref<8x128xf32, #tpu.memory_space<vmem>>) attributes {dimension_semantics = [#tpu.dimension_semantics<parallel>], iteration_bounds = array<i64: 1>, scalar_prefetch = 0 : i64, scratch_operands = 0 : i64, tpu.core_type = #tpu.core_type<tc>, window_params = [{transform_indices = @transform_0, window_bounds = array<i64: 8, 16>}, {pipeline_mode = #tpu.pipeline_mode<synchronous>, transform_indices = @transform_1, window_bounds = array<i64: 16, 64>}, {pipeline_mode = #tpu.pipeline_mode<synchronous>, transform_indices = @transform_2, window_bounds = array<i64: 1, 64>}, {pipeline_mode = #tpu.pipeline_mode<synchronous>, transform_indices = @transform_3, window_bounds = array<i64: 64, 64>}, {pipeline_mode = #tpu.pipeline_mode<synchronous>, transform_indices = @transform_4, window_bounds = array<i64: 1, 64>}, {pipeline_mode = #tpu.pipeline_mode<synchronous>, transform_indices = @transform_5, window_bounds = array<i64: 64, 128>}, {pipeline_mode = #tpu.pipeline_mode<synchronous>, transform_indices = @transform_6, window_bounds = array<i64: 1, 128>}, {transform_indices = @transform_7, window_bounds = array<i64: 8, 128>}]} {
    %c0 = arith.constant 0 : index
    %c0_0 = arith.constant 0 : index
    %0 = vector.load %arg1[%c0, %c0_0] : memref<8x16xf32, #tpu.memory_space<vmem>>, vector<8x16xf32>
    %c0_1 = arith.constant 0 : index
    %c0_2 = arith.constant 0 : index
    %1 = vector.load %arg2[%c0_1, %c0_2] : memref<16x64xf32, #tpu.memory_space<vmem>>, vector<16x64xf32>
    %cst = arith.constant dense<0.000000e+00> : vector<8x64xf32>
    %2 = tpu.matmul %0, %1, %cst {dimension_numbers = #tpu.dot_dimension_numbers<[1], [0], [0], [1], [0, 0, 1, 1], [], []>} : vector<8x16xf32>, vector<16x64xf32>, vector<8x64xf32> -> vector<8x64xf32>
    %c0_3 = arith.constant 0 : index
    %c0_4 = arith.constant 0 : index
    %3 = vector.load %arg3[%c0_3, %c0_4] : memref<1x64xf32, #tpu.memory_space<vmem>>, vector<1x64xf32>
    %4 = vector.broadcast %3 : vector<1x64xf32> to vector<8x64xf32>
    %5 = arith.addf %2, %4 : vector<8x64xf32>
    %6 = math.tanh %5 : vector<8x64xf32>
    %c0_5 = arith.constant 0 : index
    %c0_6 = arith.constant 0 : index
    %7 = vector.load %arg4[%c0_5, %c0_6] : memref<64x64xf32, #tpu.memory_space<vmem>>, vector<64x64xf32>
    %cst_7 = arith.constant dense<0.000000e+00> : vector<8x64xf32>
    %8 = tpu.matmul %6, %7, %cst_7 {dimension_numbers = #tpu.dot_dimension_numbers<[1], [0], [0], [1], [0, 0, 1, 1], [], []>} : vector<8x64xf32>, vector<64x64xf32>, vector<8x64xf32> -> vector<8x64xf32>
    %c0_8 = arith.constant 0 : index
    %c0_9 = arith.constant 0 : index
    %9 = vector.load %arg5[%c0_8, %c0_9] : memref<1x64xf32, #tpu.memory_space<vmem>>, vector<1x64xf32>
    %10 = vector.broadcast %9 : vector<1x64xf32> to vector<8x64xf32>
    %11 = arith.addf %8, %10 : vector<8x64xf32>
    %12 = math.tanh %11 : vector<8x64xf32>
    %c0_10 = arith.constant 0 : index
    %c0_11 = arith.constant 0 : index
    %13 = vector.load %arg6[%c0_10, %c0_11] : memref<64x128xf32, #tpu.memory_space<vmem>>, vector<64x128xf32>
    %cst_12 = arith.constant dense<0.000000e+00> : vector<8x128xf32>
    %14 = tpu.matmul %12, %13, %cst_12 {dimension_numbers = #tpu.dot_dimension_numbers<[1], [0], [0], [1], [0, 0, 1, 1], [], []>} : vector<8x64xf32>, vector<64x128xf32>, vector<8x128xf32> -> vector<8x128xf32>
    %c0_13 = arith.constant 0 : index
    %c0_14 = arith.constant 0 : index
    %15 = vector.load %arg7[%c0_13, %c0_14] : memref<1x128xf32, #tpu.memory_space<vmem>>, vector<1x128xf32>
    %16 = vector.broadcast %15 : vector<1x128xf32> to vector<8x128xf32>
    %17 = arith.addf %14, %16 : vector<8x128xf32>
    %18 = tpu.iota {dimensions = array<i32: 1>} : vector<8x128xi32>
    %c6_i32 = arith.constant 6 : i32
    %19 = vector.broadcast %c6_i32 : i32 to vector<8x128xi32>
    %20 = arith.cmpi sge, %18, %19 : vector<8x128xi32>
    %c9_i32 = arith.constant 9 : i32
    %21 = vector.broadcast %c9_i32 : i32 to vector<8x128xi32>
    %22 = arith.cmpi slt, %18, %21 : vector<8x128xi32>
    %23 = arith.andi %20, %22 : vector<8x128xi1>
    %24 = math.tanh %17 : vector<8x128xf32>
    %25 = arith.select %23, %24, %17 : vector<8x128xi1>, vector<8x128xf32>
    %c0_15 = arith.constant 0 : index
    %c0_16 = arith.constant 0 : index
    %26 = vector.load %arg8[%c0_15, %c0_16] : memref<8x128xf32, #tpu.memory_space<vmem>>, vector<8x128xf32>
    tpu.vector_store %arg8[%c0_15, %c0_16], %25 {strides = array<i32>} : memref<8x128xf32, #tpu.memory_space<vmem>>, vector<8x128xf32>,
    return
  }
  func.func @transform_0(%arg0: i32) -> (i32, i32) {
    %c0_i32 = arith.constant 0 : i32
    %c0_i32_0 = arith.constant 0 : i32
    return %arg0, %c0_i32 : i32, i32
  }
  func.func @transform_1(%arg0: i32) -> (i32, i32) {
    %c0_i32 = arith.constant 0 : i32
    %c0_i32_0 = arith.constant 0 : i32
    %c0_i32_1 = arith.constant 0 : i32
    return %c0_i32, %c0_i32_0 : i32, i32
  }
  func.func @transform_2(%arg0: i32) -> (i32, i32) {
    %c0_i32 = arith.constant 0 : i32
    %c0_i32_0 = arith.constant 0 : i32
    %c0_i32_1 = arith.constant 0 : i32
    return %c0_i32, %c0_i32_0 : i32, i32
  }
  func.func @transform_3(%arg0: i32) -> (i32, i32) {
    %c0_i32 = arith.constant 0 : i32
    %c0_i32_0 = arith.constant 0 : i32
    %c0_i32_1 = arith.constant 0 : i32
    return %c0_i32, %c0_i32_0 : i32, i32
  }
  func.func @transform_4(%arg0: i32) -> (i32, i32) {
    %c0_i32 = arith.constant 0 : i32
    %c0_i32_0 = arith.constant 0 : i32
    %c0_i32_1 = arith.constant 0 : i32
    return %c0_i32, %c0_i32_0 : i32, i32
  }
  func.func @transform_5(%arg0: i32) -> (i32, i32) {
    %c0_i32 = arith.constant 0 : i32
    %c0_i32_0 = arith.constant 0 : i32
    %c0_i32_1 = arith.constant 0 : i32
    return %c0_i32, %c0_i32_0 : i32, i32
  }
  func.func @transform_6(%arg0: i32) -> (i32, i32) {
    %c0_i32 = arith.constant 0 : i32
    %c0_i32_0 = arith.constant 0 : i32
    %c0_i32_1 = arith.constant 0 : i32
    return %c0_i32, %c0_i32_0 : i32, i32
  }
  func.func @transform_7(%arg0: i32) -> (i32, i32) {
    %c0_i32 = arith.constant 0 : i32
    %c0_i32_0 = arith.constant 0 : i32
    return %arg0, %c0_i32 : i32, i32
  }
}

</mosaic_0001>

<llo_original>
// kernel: actor_critic_forward.1
$region0: #{actor_critic_forward.1}
  #allocation0 [shape = 'u32[]', space=smem, size = 0x4, offset = 0x4, fixed_abs, tag = 'smem constant byte address 0x4 - core index']
  #allocation1 [shape = 'u32[144,128]{1,0:T(1,128)}', space=vmem, size = 0x12000, scoped, tag = 'internal scratch']
  %s0 = inlined_call_operand.vmem [shape: f32[8,16], index: 0, kind: input, shape index: {}]
  %s1 = inlined_call_operand.vmem [shape: f32[16,64], index: 1, kind: input, shape index: {}]
  %s2 = inlined_call_operand.vmem [shape: f32[1,64], index: 2, kind: input, shape index: {}]
  %s3 = inlined_call_operand.vmem [shape: f32[64,64], index: 3, kind: input, shape index: {}]
  %s4 = inlined_call_operand.vmem [shape: f32[1,64], index: 4, kind: input, shape index: {}]
  %s5 = inlined_call_operand.vmem [shape: f32[64,128], index: 5, kind: input, shape index: {}]
  %s6 = inlined_call_operand.vmem [shape: f32[1,128], index: 6, kind: input, shape index: {}]
  %s7 = inlined_call_operand.vmem [shape: f32[8,128], index: 7, kind: output, shape index: {}]
  %s8 = sld [smem:[#allocation0]]
  $region38: #{actor_critic_forward.1} parent=0
    _
  %s10 = ssub.s32 1, %s8
  %s11 = scalar_select 0, %s10, %s8
  // Predicated region
  $region2: #{actor_critic_forward.1} parent=0 // pred_check
    _
  $region3: #{actor_critic_forward.1} parent=0 // pred_check_branch
    %13 = sbr.rel (0) target = $region5
  $region4: #{actor_critic_forward.1} parent=0 // pred_region
    _
  $region5: #{actor_critic_forward.1} parent=0 // pred_fallthru
    _
  // Predicated region
  $region6: #{actor_critic_forward.1} parent=0 // pred_check
    _
  $region7: #{actor_critic_forward.1} parent=0 // pred_check_branch
    %15 = sbr.rel (0) target = $region9
  $region8: #{actor_critic_forward.1} parent=0 // pred_region
    _
  $region9: #{actor_critic_forward.1} parent=0 // pred_fallthru
    _
  // Predicated region
  $region10: #{actor_critic_forward.1} parent=0 // pred_check
    _
  $region11: #{actor_critic_forward.1} parent=0 // pred_check_branch
    %17 = sbr.rel (0) target = $region13
  $region12: #{actor_critic_forward.1} parent=0 // pred_region
    _
  $region13: #{actor_critic_forward.1} parent=0 // pred_fallthru
    _
  // Predicated region
  $region14: #{actor_critic_forward.1} parent=0 // pred_check
    _
  $region15: #{actor_critic_forward.1} parent=0 // pred_check_branch
    %19 = sbr.rel (0) target = $region17
  $region16: #{actor_critic_forward.1} parent=0 // pred_region
    _
  $region17: #{actor_critic_forward.1} parent=0 // pred_fallthru
    _
  // Predicated region
  $region18: #{actor_critic_forward.1} parent=0 // pred_check
    _
  $region19: #{actor_critic_forward.1} parent=0 // pred_check_branch
    %21 = sbr.rel (0) target = $region21
  $region20: #{actor_critic_forward.1} parent=0 // pred_region
    _
  $region21: #{actor_critic_forward.1} parent=0 // pred_fallthru
    _
  // Predicated region
  $region22: #{actor_critic_forward.1} parent=0 // pred_check
    _
  $region23: #{actor_critic_forward.1} parent=0 // pred_check_branch
    %23 = sbr.rel (0) target = $region25
  $region24: #{actor_critic_forward.1} parent=0 // pred_region
    _
  $region25: #{actor_critic_forward.1} parent=0 // pred_fallthru
    _
  // Predicated region
  $region26: #{actor_critic_forward.1} parent=0 // pred_check
    _
  $region27: #{actor_critic_forward.1} parent=0 // pred_check_branch
    %25 = sbr.rel (0) target = $region29
  $region28: #{actor_critic_forward.1} parent=0 // pred_region
    _
  $region29: #{actor_critic_forward.1} parent=0 // pred_fallthru
    _
  %v26 = vld [vmem:[%s0] sm:$0xff]
  %v27 = vld [vmem:[%s1] sm:$0xff]
  %v28 = vld [vmem:[%s1 + $0x8] sm:$0xff]
  %v29 = vld [vmem:[%s2] sm:$0x1]
  %v31 = vlaneseq
  %v32 = vshrl.u32 %v31, 7
  %v33 = vsub.s32 0, %v32
  %v34 = vrot.slane %v29, %v33
  %vm36 = vcmask 130048
  %v38 = vsel %vm36, %v26, 0
  %40 = vmatprep.subr.mxu0 0.0
  %41 = vmatpush1.msra.mxu0 %v27
  %42 = vmatprep.subr.mxu0 0.0
  %43 = vmatpush1.msra.mxu0 %v28
  %44 = vmatprep.subr.mxu0 0.0
  %45 = vmatpush1.msra.mxu0 0.0
  %46 = vmatprep.subr.mxu0 0.0
  %47 = vmatpush1.msra.mxu0 0.0
  %48 = vmatprep.subr.mxu0 0.0
  %49 = vmatpush1.msra.mxu0 0.0
  %50 = vmatprep.subr.mxu0 0.0
  %51 = vmatpush1.msra.mxu0 0.0
  %52 = vmatprep.subr.mxu0 0.0
  %53 = vmatpush1.msra.mxu0 0.0
  %54 = vmatprep.subr.mxu0 0.0
  %55 = vmatpush1.msra.mxu0 0.0
  %56 = vmatprep.subr.mxu0 0.0
  %57 = vmatpush1.msra.mxu0 0.0
  %58 = vmatprep.subr.mxu0 0.0
  %59 = vmatpush1.msra.mxu0 0.0
  %60 = vmatprep.subr.mxu0 0.0
  %61 = vmatpush1.msra.mxu0 0.0
  %62 = vmatprep.subr.mxu0 0.0
  %63 = vmatpush1.msra.mxu0 0.0
  %64 = vmatprep.subr.mxu0 0.0
  %65 = vmatpush1.msra.mxu0 0.0
  %66 = vmatprep.subr.mxu0 0.0
  %67 = vmatpush1.msra.mxu0 0.0
  %68 = vmatprep.subr.mxu0 0.0
  %69 = vmatpush1.msra.mxu0 0.0
  %70 = vmatprep.subr.mxu0 0.0
  %71 = vmatpush1.msra.mxu0 0.0
  %72 = vmatprep.subr.mxu0 0.0
  %73 = vmatpush1.msra.mxu0 0.0
  %74 = vmatprep.subr.mxu0 0.0
  %75 = vmatpush1.msra.mxu0 0.0
  %76 = vmatprep.subr.mxu0 0.0
  %77 = vmatpush1.msra.mxu0 0.0
  %78 = vmatprep.subr.mxu0 0.0
  %79 = vmatpush1.msra.mxu0 0.0
  %80 = vmatprep.subr.mxu0 0.0
  %81 = vmatpush1.msra.mxu0 0.0
  %82 = vmatprep.subr.mxu0 0.0
  %83 = vmatpush1.msra.mxu0 0.0
  %84 = vmatprep.subr.mxu0 0.0
  %85 = vmatpush1.msra.mxu0 0.0
  %86 = vmatprep.subr.mxu0 0.0
  %87 = vmatpush1.msra.mxu0 0.0
  %88 = vmatprep.subr.mxu0 0.0
  %89 = vmatpush1.msra.mxu0 0.0
  %90 = vmatprep.subr.mxu0 0.0
  %91 = vmatpush1.msra.mxu0 0.0
  %92 = vmatprep.subr.mxu0 0.0
  %93 = vmatpush1.msra.mxu0 0.0
  %94 = vmatprep.subr.mxu0 0.0
  %95 = vmatpush1.msra.mxu0 0.0
  %96 = vmatprep.subr.mxu0 0.0
  %97 = vmatpush1.msra.mxu0 0.0
  %98 = vmatprep.subr.mxu0 0.0
  %99 = vmatpush1.msra.mxu0 0.0
  %100 = vmatprep.subr.mxu0 0.0
  %101 = vmatpush1.msra.mxu0 0.0
  %102 = vmatprep.subr.mxu0 0.0
  %103 = vmatpush1.msra.mxu0 0.0
  %104 = vmatprep.mubr.f32.mxu0 0.0
  %105 = vmatmul.mubr.f32.gmra.mrb[0].mxu0 %v38
  %v106 = vpop.f32.mrb[0].mxu0
  %v107 = vadd.f32 %v34, %v106
  %v108 = vpop.f32.mrb[0].mxu0
  %109 = vdwg.mxu0
  %v110 = vtanh.pop %v107
  %v111 = vld [vmem:[%s3] sm:$0xff]
  %v112 = vld [vmem:[%s3 + $0x8] sm:$0xff]
  %v113 = vld [vmem:[%s3 + $0x10] sm:$0xff]
  %v114 = vld [vmem:[%s3 + $0x18] sm:$0xff]
  %v115 = vld [vmem:[%s3 + $0x20] sm:$0xff]
  %v116 = vld [vmem:[%s3 + $0x28] sm:$0xff]
  %v117 = vld [vmem:[%s3 + $0x30] sm:$0xff]
  %v118 = vld [vmem:[%s3 + $0x38] sm:$0xff]
  %v119 = vld [vmem:[%s4] sm:$0x1]
  %v121 = vlaneseq
  %v122 = vshrl.u32 %v121, 7
  %v123 = vsub.s32 0, %v122
  %v124 = vrot.slane %v119, %v123
  %vm126 = vcmask 523264
  %v128 = vsel %vm126, %v110, 0
  %130 = vmatprep.subr.mxu0 0.0
  %131 = vmatpush1.msra.mxu0 %v111
  %132 = vmatprep.subr.mxu0 0.0
  %133 = vmatpush1.msra.mxu0 %v112
  %134 = vmatprep.subr.mxu0 0.0
  %135 = vmatpush1.msra.mxu0 %v113
  %136 = vmatprep.subr.mxu0 0.0
  %137 = vmatpush1.msra.mxu0 %v114
  %138 = vmatprep.subr.mxu0 0.0
  %139 = vmatpush1.msra.mxu0 %v115
  %140 = vmatprep.subr.mxu0 0.0
  %141 = vmatpush1.msra.mxu0 %v116
  %142 = vmatprep.subr.mxu0 0.0
  %143 = vmatpush1.msra.mxu0 %v117
  %144 = vmatprep.subr.mxu0 0.0
  %145 = vmatpush1.msra.mxu0 %v118
  %146 = vmatprep.subr.mxu0 0.0
  %147 = vmatpush1.msra.mxu0 0.0
  %148 = vmatprep.subr.mxu0 0.0
  %149 = vmatpush1.msra.mxu0 0.0
  %150 = vmatprep.subr.mxu0 0.0
  %151 = vmatpush1.msra.mxu0 0.0
  %152 = vmatprep.subr.mxu0 0.0
  %153 = vmatpush1.msra.mxu0 0.0
  %154 = vmatprep.subr.mxu0 0.0
  %155 = vmatpush1.msra.mxu0 0.0
  %156 = vmatprep.subr.mxu0 0.0
  %157 = vmatpush1.msra.mxu0 0.0
  %158 = vmatprep.subr.mxu0 0.0
  %159 = vmatpush1.msra.mxu0 0.0
  %160 = vmatprep.subr.mxu0 0.0
  %161 = vmatpush1.msra.mxu0 0.0
  %162 = vmatprep.subr.mxu0 0.0
  %163 = vmatpush1.msra.mxu0 0.0
  %164 = vmatprep.subr.mxu0 0.0
  %165 = vmatpush1.msra.mxu0 0.0
  %166 = vmatprep.subr.mxu0 0.0
  %167 = vmatpush1.msra.mxu0 0.0
  %168 = vmatprep.subr.mxu0 0.0
  %169 = vmatpush1.msra.mxu0 0.0
  %170 = vmatprep.subr.mxu0 0.0
  %171 = vmatpush1.msra.mxu0 0.0
  %172 = vmatprep.subr.mxu0 0.0
  %173 = vmatpush1.msra.mxu0 0.0
  %174 = vmatprep.subr.mxu0 0.0
  %175 = vmatpush1.msra.mxu0 0.0
  %176 = vmatprep.subr.mxu0 0.0
  %177 = vmatpush1.msra.mxu0 0.0
  %178 = vmatprep.subr.mxu0 0.0
  %179 = vmatpush1.msra.mxu0 0.0
  %180 = vmatprep.subr.mxu0 0.0
  %181 = vmatpush1.msra.mxu0 0.0
  %182 = vmatprep.subr.mxu0 0.0
  %183 = vmatpush1.msra.mxu0 0.0
  %184 = vmatprep.subr.mxu0 0.0
  %185 = vmatpush1.msra.mxu0 0.0
  %186 = vmatprep.subr.mxu0 0.0
  %187 = vmatpush1.msra.mxu0 0.0
  %188 = vmatprep.subr.mxu0 0.0
  %189 = vmatpush1.msra.mxu0 0.0
  %190 = vmatprep.subr.mxu0 0.0
  %191 = vmatpush1.msra.mxu0 0.0
  %192 = vmatprep.subr.mxu0 0.0
  %193 = vmatpush1.msra.mxu0 0.0
  %194 = vmatprep.mubr.f32.mxu0 0.0
  %195 = vmatmul.mubr.f32.gmra.mrb[0].mxu0 %v128
  %v196 = vpop.f32.mrb[0].mxu0
  %v197 = vadd.f32 %v124, %v196
  %v198 = vpop.f32.mrb[0].mxu0
  %199 = vdwg.mxu0
  %v200 = vtanh.pop %v197
  %v201 = vld [vmem:[%s5] sm:$0xff]
  %v202 = vld [vmem:[%s5 + $0x8] sm:$0xff]
  %v203 = vld [vmem:[%s5 + $0x10] sm:$0xff]
  %v204 = vld [vmem:[%s5 + $0x18] sm:$0xff]
  %v205 = vld [vmem:[%s5 + $0x20] sm:$0xff]
  %v206 = vld [vmem:[%s5 + $0x28] sm:$0xff]
  %v207 = vld [vmem:[%s5 + $0x30] sm:$0xff]
  %v208 = vld [vmem:[%s5 + $0x38] sm:$0xff]
  %v209 = vld [vmem:[%s6] sm:$0x1]
  %v211 = vlaneseq
  %v212 = vshrl.u32 %v211, 7
  %v213 = vsub.s32 0, %v212
  %v214 = vrot.slane %v209, %v213
  %v217 = vsel %vm126, %v200, 0
  %219 = vmatprep.subr.mxu0 0.0
  %220 = vmatpush1.msra.mxu0 %v201
  %221 = vmatprep.subr.mxu0 0.0
  %222 = vmatpush1.msra.mxu0 %v202
  %223 = vmatprep.subr.mxu0 0.0
  %224 = vmatpush1.msra.mxu0 %v203
  %225 = vmatprep.subr.mxu0 0.0
  %226 = vmatpush1.msra.mxu0 %v204
  %227 = vmatprep.subr.mxu0 0.0
  %228 = vmatpush1.msra.mxu0 %v205
  %229 = vmatprep.subr.mxu0 0.0
  %230 = vmatpush1.msra.mxu0 %v206
  %231 = vmatprep.subr.mxu0 0.0
  %232 = vmatpush1.msra.mxu0 %v207
  %233 = vmatprep.subr.mxu0 0.0
  %234 = vmatpush1.msra.mxu0 %v208
  %235 = vmatprep.subr.mxu0 0.0
  %236 = vmatpush1.msra.mxu0 0.0
  %237 = vmatprep.subr.mxu0 0.0
  %238 = vmatpush1.msra.mxu0 0.0
  %239 = vmatprep.subr.mxu0 0.0
  %240 = vmatpush1.msra.mxu0 0.0
  %241 = vmatprep.subr.mxu0 0.0
  %242 = vmatpush1.msra.mxu0 0.0
  %243 = vmatprep.subr.mxu0 0.0
  %244 = vmatpush1.msra.mxu0 0.0
  %245 = vmatprep.subr.mxu0 0.0
  %246 = vmatpush1.msra.mxu0 0.0
  %247 = vmatprep.subr.mxu0 0.0
  %248 = vmatpush1.msra.mxu0 0.0
  %249 = vmatprep.subr.mxu0 0.0
  %250 = vmatpush1.msra.mxu0 0.0
  %251 = vmatprep.subr.mxu0 0.0
  %252 = vmatpush1.msra.mxu0 0.0
  %253 = vmatprep.subr.mxu0 0.0
  %254 = vmatpush1.msra.mxu0 0.0
  %255 = vmatprep.subr.mxu0 0.0
  %256 = vmatpush1.msra.mxu0 0.0
  %257 = vmatprep.subr.mxu0 0.0
  %258 = vmatpush1.msra.mxu0 0.0
  %259 = vmatprep.subr.mxu0 0.0
  %260 = vmatpush1.msra.mxu0 0.0
  %261 = vmatprep.subr.mxu0 0.0
  %262 = vmatpush1.msra.mxu0 0.0
  %263 = vmatprep.subr.mxu0 0.0
  %264 = vmatpush1.msra.mxu0 0.0
  %265 = vmatprep.subr.mxu0 0.0
  %266 = vmatpush1.msra.mxu0 0.0
  %267 = vmatprep.subr.mxu0 0.0
  %268 = vmatpush1.msra.mxu0 0.0
  %269 = vmatprep.subr.mxu0 0.0
  %270 = vmatpush1.msra.mxu0 0.0
  %271 = vmatprep.subr.mxu0 0.0
  %272 = vmatpush1.msra.mxu0 0.0
  %273 = vmatprep.subr.mxu0 0.0
  %274 = vmatpush1.msra.mxu0 0.0
  %275 = vmatprep.subr.mxu0 0.0
  %276 = vmatpush1.msra.mxu0 0.0
  %277 = vmatprep.subr.mxu0 0.0
  %278 = vmatpush1.msra.mxu0 0.0
  %279 = vmatprep.subr.mxu0 0.0
  %280 = vmatpush1.msra.mxu0 0.0
  %281 = vmatprep.subr.mxu0 0.0
  %282 = vmatpush1.msra.mxu0 0.0
  %283 = vmatprep.mubr.f32.mxu0 0.0
  %284 = vmatmul.mubr.f32.gmra.mrb[0].mxu0 %v217
  %v285 = vpop.f32.mrb[0].mxu0
  %v286 = vadd.f32 %v214, %v285
  %v287 = vpop.f32.mrb[0].mxu0
  %288 = vdwg.mxu0
  %v289 = vlaneseq
  %v290 = vand.u32 %v289, 127
  %vm291 = vcmp.ge.s32.totalorder %v290, 6
  %vm292 = vcmp.lt.s32.totalorder %v290, 9
  %vm293 = vmand %vm291, %vm292
  %v294 = vtanh.pop %v286
  %v295 = vsel %vm293, %v294, %v286
  %296 = vst [vmem:[%s7] sm:$0xff] %v295
  // Predicated region
  $region30: #{actor_critic_forward.1} parent=0 // pred_check
    _
  $region31: #{actor_critic_forward.1} parent=0 // pred_check_branch
    %298 = sbr.rel (0) target = $region33
  $region32: #{actor_critic_forward.1} parent=0 // pred_region
    _
  $region33: #{actor_critic_forward.1} parent=0 // pred_fallthru
    _
  // Predicated region
  $region34: #{actor_critic_forward.1} parent=0 // pred_check
    _
  $region35: #{actor_critic_forward.1} parent=0 // pred_check_branch
    %300 = sbr.rel (0) target = $region37
  $region36: #{actor_critic_forward.1} parent=0 // pred_region
    _
  $region37: #{actor_critic_forward.1} parent=0 // pred_fallthru
    _

</llo_original>
